<compile_context>
chip_gen: v7x
topology: tpu7x:2x2x1
jax: 0.10.0
libtpu: 0.0.40
codegen_flags: <defaults>
</compile_context>

<pallas_src>
import math
import string

import jax
import jax.numpy as jnp
from jax.experimental import pallas as pl
from jax.experimental.pallas import tpu as pltpu

VOCAB = string.ascii_letters + " .,;'$"
INPUT_SIZE = len(VOCAB)          # 58
HIDDEN = 16
# TODO(synk): the source file has n_categories = len(all_categories) == 0 (empty list);
# a Linear with 0 outputs is degenerate, so we use 8 categories for this synthetic kernel.
N_CATEGORIES = 8


def rnn_kernel(x_ref, w_ih_ref, w_hh_ref, b_ref, w_out_ref, b_out_ref,
               out_ref, xw_ref, h_ref):
    """Elman RNN (tanh) over the full sequence + final Linear on the last hidden state.

    x_ref:     (T*B, V)   VMEM   (time-major rows, flattened & lane-dense)
    w_ih_ref:  (V, H)     VMEM   (pre-transposed PyTorch weight_ih_l0)
    w_hh_ref:  (H, H)     VMEM   (pre-transposed PyTorch weight_hh_l0)
    b_ref:     (1, H)     VMEM   (b_ih + b_hh)
    w_out_ref: (H, C)     VMEM   (pre-transposed output Linear weight)
    b_out_ref: (1, C)     VMEM
    out_ref:   (B, C)     VMEM   output
    xw_ref:    (T*B, H)   VMEM   scratch (precomputed input projection)
    h_ref:     (B, H)     VMEM   scratch (hidden state carry)
    """
    B = h_ref.shape[0]
    TB = xw_ref.shape[0]
    T = TB // B

    # (1) Batched input projection for ALL time steps at once — no serial dependence,
    #     so pay the MXU push/pop latency once instead of T times.  Bias folded in.
    xw_ref[...] = (jnp.dot(x_ref[...], w_ih_ref[...],
                           preferred_element_type=jnp.float32)
                   + b_ref[...])

    # (2) Hoist the loop-invariant recurrence weight out of the unrolled loop
    #     (JAX does not CSE per-iteration loads/broadcasts).
    w_hh = w_hh_ref[...]                                   # (H, H), fits in 2 vregs

    h_ref[...] = jnp.zeros_like(h_ref)

    def step(t, carry):
        row = t * B
        if B % 8 == 0:                                     # static check at trace time
            row = pl.multiple_of(row, 8)                   # aligned sublane-group slice
        xw_t = xw_ref[pl.ds(row, B), :]                    # (B, H)
        # Serial recurrence: only one small matmul + add + tanh on the critical path.
        h_ref[...] = jnp.tanh(
            xw_t + jnp.dot(h_ref[...], w_hh, preferred_element_type=jnp.float32))
        return carry

    jax.lax.fori_loop(0, T, step, 0, unroll=True)          # T is small & static

    # Final Linear on the last time step's output (== last hidden state, 1-layer RNN).
    out_ref[...] = (jnp.dot(h_ref[...], w_out_ref[...],
                            preferred_element_type=jnp.float32)
                    + b_out_ref[...])


def model_forward(x, params):
    """x: (T, B, V) float32 -> (B, N_CATEGORIES) float32."""
    T, B, V = x.shape
    assert V == INPUT_SIZE
    w_ih, w_hh, b_ih, b_hh, w_out, b_out = params

    # Glue reshapes / transposes in plain JAX; all matmuls happen inside the kernel.
    x_flat = x.reshape(T * B, V)          # lane/sublane-dense layout for the kernel
    w_ih_t = w_ih.T                       # (V, H)
    w_hh_t = w_hh.T                       # (H, H)
    b_rnn = (b_ih + b_hh)[None, :]        # (1, H)
    w_out_t = w_out.T                     # (H, C)
    b_out_r = b_out[None, :]              # (1, C)

    vmem = pl.BlockSpec(memory_space=pltpu.MemorySpace.VMEM)
    return pl.pallas_call(
        rnn_kernel,
        out_shape=jax.ShapeDtypeStruct((B, N_CATEGORIES), jnp.float32),
        in_specs=[vmem] * 6,
        out_specs=vmem,
        scratch_shapes=[pltpu.VMEM((T * B, HIDDEN), jnp.float32),   # xW projection
                        pltpu.VMEM((B, HIDDEN), jnp.float32)],      # hidden carry
    )(x_flat, w_ih_t, w_hh_t, b_rnn, w_out_t, b_out_r)


def init_params(key):
    """Deterministic init mirroring PyTorch's default U(-1/sqrt(H), 1/sqrt(H))."""
    k_rnn = 1.0 / math.sqrt(HIDDEN)
    k_out = 1.0 / math.sqrt(HIDDEN)       # Linear fan_in = HIDDEN
    ks = jax.random.split(key, 6)
    w_ih = jax.random.uniform(ks[0], (HIDDEN, INPUT_SIZE), jnp.float32, -k_rnn, k_rnn)
    w_hh = jax.random.uniform(ks[1], (HIDDEN, HIDDEN), jnp.float32, -k_rnn, k_rnn)
    b_ih = jax.random.uniform(ks[2], (HIDDEN,), jnp.float32, -k_rnn, k_rnn)
    b_hh = jax.random.uniform(ks[3], (HIDDEN,), jnp.float32, -k_rnn, k_rnn)
    w_out = jax.random.uniform(ks[4], (N_CATEGORIES, HIDDEN), jnp.float32, -k_out, k_out)
    b_out = jax.random.uniform(ks[5], (N_CATEGORIES,), jnp.float32, -k_out, k_out)
    return w_ih, w_hh, b_ih, b_hh, w_out, b_out


def reference_forward(x, params):
    """Pure-JAX reference matching torch.nn.RNN + Linear semantics."""
    w_ih, w_hh, b_ih, b_hh, w_out, b_out = params
    T, B, _ = x.shape
    h = jnp.zeros((B, HIDDEN), jnp.float32)

    def scan_step(h, x_t):
        h = jnp.tanh(x_t @ w_ih.T + b_ih + h @ w_hh.T + b_hh)
        return h, h

    h_last, _ = jax.lax.scan(scan_step, h, x)
    return h_last @ w_out.T + b_out


if __name__ == "__main__":
    key = jax.random.PRNGKey(0)
    k_param, k_x = jax.random.split(key)

    T, B = 8, 8          # B=8 fills all sublanes; extra rows are free on the MXU
    x = jax.random.normal(k_x, (T, B, INPUT_SIZE), jnp.float32)
    params = init_params(k_param)

    out = model_forward(x, params)
    out = jax.block_until_ready(out)

    ref = reference_forward(x, params)
    assert out.shape == (B, N_CATEGORIES)
    assert jnp.allclose(out, ref, atol=1e-5, rtol=1e-5), (out, ref)

    print("KERNEL_OK")
</pallas_src>

<mosaic_0001>
module attributes {stable_mosaic.version = 11 : i64} {
  func.func @rnn_kernel(%arg0: memref<64x58xf32, #tpu.memory_space<vmem>>, %arg1: memref<58x16xf32, #tpu.memory_space<vmem>>, %arg2: memref<16x16xf32, #tpu.memory_space<vmem>>, %arg3: memref<1x16xf32, #tpu.memory_space<vmem>>, %arg4: memref<16x8xf32, #tpu.memory_space<vmem>>, %arg5: memref<1x8xf32, #tpu.memory_space<vmem>>, %arg6: memref<8x8xf32, #tpu.memory_space<vmem>>, %arg7: memref<64x16xf32, #tpu.memory_space<vmem>>, %arg8: memref<8x16xf32, #tpu.memory_space<vmem>>) attributes {dimension_semantics = [], scalar_prefetch = 0 : i64, scratch_operands = 2 : i64, tpu.core_type = #tpu.core_type<tc>} {
    %c0 = arith.constant 0 : index
    %c0_0 = arith.constant 0 : index
    %0 = vector.load %arg0[%c0, %c0_0] : memref<64x58xf32, #tpu.memory_space<vmem>>, vector<64x58xf32>
    %c0_1 = arith.constant 0 : index
    %c0_2 = arith.constant 0 : index
    %1 = vector.load %arg1[%c0_1, %c0_2] : memref<58x16xf32, #tpu.memory_space<vmem>>, vector<58x16xf32>
    %cst = arith.constant dense<0.000000e+00> : vector<64x16xf32>
    %2 = tpu.matmul %0, %1, %cst {dimension_numbers = #tpu.dot_dimension_numbers<[1], [0], [0], [1], [0, 0, 1, 1], [], []>} : vector<64x58xf32>, vector<58x16xf32>, vector<64x16xf32> -> vector<64x16xf32>
    %c0_3 = arith.constant 0 : index
    %c0_4 = arith.constant 0 : index
    %3 = vector.load %arg3[%c0_3, %c0_4] : memref<1x16xf32, #tpu.memory_space<vmem>>, vector<1x16xf32>
    %4 = vector.broadcast %3 : vector<1x16xf32> to vector<64x16xf32>
    %5 = arith.addf %2, %4 : vector<64x16xf32>
    %c0_5 = arith.constant 0 : index
    %c0_6 = arith.constant 0 : index
    %6 = vector.load %arg7[%c0_5, %c0_6] : memref<64x16xf32, #tpu.memory_space<vmem>>, vector<64x16xf32>
    tpu.vector_store %arg7[%c0_5, %c0_6], %5 {strides = array<i32>} : memref<64x16xf32, #tpu.memory_space<vmem>>, vector<64x16xf32>,
    %c0_7 = arith.constant 0 : index
    %c0_8 = arith.constant 0 : index
    %7 = vector.load %arg2[%c0_7, %c0_8] : memref<16x16xf32, #tpu.memory_space<vmem>>, vector<16x16xf32>
    %cst_9 = arith.constant 0.000000e+00 : f32
    %8 = vector.broadcast %cst_9 : f32 to vector<8x16xf32>
    %c0_10 = arith.constant 0 : index
    %c0_11 = arith.constant 0 : index
    %9 = vector.load %arg8[%c0_10, %c0_11] : memref<8x16xf32, #tpu.memory_space<vmem>>, vector<8x16xf32>
    tpu.vector_store %arg8[%c0_10, %c0_11], %8 {strides = array<i32>} : memref<8x16xf32, #tpu.memory_space<vmem>>, vector<8x16xf32>,
    %c0_i32 = arith.constant 0 : i32
    %c8_i32 = arith.constant 8 : i32
    %10 = arith.muli %c0_i32, %c8_i32 : i32
    %11 = tpu.assume_multiple %10, 8 : i32
    %12 = arith.index_cast %11 : i32 to index
    %c0_12 = arith.constant 0 : index
    %13 = vector.load %arg7[%12, %c0_12] : memref<64x16xf32, #tpu.memory_space<vmem>>, vector<8x16xf32>
    %c0_13 = arith.constant 0 : index
    %c0_14 = arith.constant 0 : index
    %14 = vector.load %arg8[%c0_13, %c0_14] : memref<8x16xf32, #tpu.memory_space<vmem>>, vector<8x16xf32>
    %cst_15 = arith.constant dense<0.000000e+00> : vector<8x16xf32>
    %15 = tpu.matmul %14, %7, %cst_15 {dimension_numbers = #tpu.dot_dimension_numbers<[1], [0], [0], [1], [0, 0, 1, 1], [], []>} : vector<8x16xf32>, vector<16x16xf32>, vector<8x16xf32> -> vector<8x16xf32>
    %16 = arith.addf %13, %15 : vector<8x16xf32>
    %17 = math.tanh %16 : vector<8x16xf32>
    %c0_16 = arith.constant 0 : index
    %c0_17 = arith.constant 0 : index
    %18 = vector.load %arg8[%c0_16, %c0_17] : memref<8x16xf32, #tpu.memory_space<vmem>>, vector<8x16xf32>
    tpu.vector_store %arg8[%c0_16, %c0_17], %17 {strides = array<i32>} : memref<8x16xf32, #tpu.memory_space<vmem>>, vector<8x16xf32>,
    %c1_i32 = arith.constant 1 : i32
    %c8_i32_18 = arith.constant 8 : i32
    %19 = arith.muli %c1_i32, %c8_i32_18 : i32
    %20 = tpu.assume_multiple %19, 8 : i32
    %21 = arith.index_cast %20 : i32 to index
    %c0_19 = arith.constant 0 : index
    %22 = vector.load %arg7[%21, %c0_19] : memref<64x16xf32, #tpu.memory_space<vmem>>, vector<8x16xf32>
    %c0_20 = arith.constant 0 : index
    %c0_21 = arith.constant 0 : index
    %23 = vector.load %arg8[%c0_20, %c0_21] : memref<8x16xf32, #tpu.memory_space<vmem>>, vector<8x16xf32>
    %cst_22 = arith.constant dense<0.000000e+00> : vector<8x16xf32>
    %24 = tpu.matmul %23, %7, %cst_22 {dimension_numbers = #tpu.dot_dimension_numbers<[1], [0], [0], [1], [0, 0, 1, 1], [], []>} : vector<8x16xf32>, vector<16x16xf32>, vector<8x16xf32> -> vector<8x16xf32>
    %25 = arith.addf %22, %24 : vector<8x16xf32>
    %26 = math.tanh %25 : vector<8x16xf32>
    %c0_23 = arith.constant 0 : index
    %c0_24 = arith.constant 0 : index
    %27 = vector.load %arg8[%c0_23, %c0_24] : memref<8x16xf32, #tpu.memory_space<vmem>>, vector<8x16xf32>
    tpu.vector_store %arg8[%c0_23, %c0_24], %26 {strides = array<i32>} : memref<8x16xf32, #tpu.memory_space<vmem>>, vector<8x16xf32>,
    %c2_i32 = arith.constant 2 : i32
    %c8_i32_25 = arith.constant 8 : i32
    %28 = arith.muli %c2_i32, %c8_i32_25 : i32
    %29 = tpu.assume_multiple %28, 8 : i32
    %30 = arith.index_cast %29 : i32 to index
    %c0_26 = arith.constant 0 : index
    %31 = vector.load %arg7[%30, %c0_26] : memref<64x16xf32, #tpu.memory_space<vmem>>, vector<8x16xf32>
    %c0_27 = arith.constant 0 : index
    %c0_28 = arith.constant 0 : index
    %32 = vector.load %arg8[%c0_27, %c0_28] : memref<8x16xf32, #tpu.memory_space<vmem>>, vector<8x16xf32>
    %cst_29 = arith.constant dense<0.000000e+00> : vector<8x16xf32>
    %33 = tpu.matmul %32, %7, %cst_29 {dimension_numbers = #tpu.dot_dimension_numbers<[1], [0], [0], [1], [0, 0, 1, 1], [], []>} : vector<8x16xf32>, vector<16x16xf32>, vector<8x16xf32> -> vector<8x16xf32>
    %34 = arith.addf %31, %33 : vector<8x16xf32>
    %35 = math.tanh %34 : vector<8x16xf32>
    %c0_30 = arith.constant 0 : index
    %c0_31 = arith.constant 0 : index
    %36 = vector.load %arg8[%c0_30, %c0_31] : memref<8x16xf32, #tpu.memory_space<vmem>>, vector<8x16xf32>
    tpu.vector_store %arg8[%c0_30, %c0_31], %35 {strides = array<i32>} : memref<8x16xf32, #tpu.memory_space<vmem>>, vector<8x16xf32>,
    %c3_i32 = arith.constant 3 : i32
    %c8_i32_32 = arith.constant 8 : i32
    %37 = arith.muli %c3_i32, %c8_i32_32 : i32
    %38 = tpu.assume_multiple %37, 8 : i32
    %39 = arith.index_cast %38 : i32 to index
    %c0_33 = arith.constant 0 : index
    %40 = vector.load %arg7[%39, %c0_33] : memref<64x16xf32, #tpu.memory_space<vmem>>, vector<8x16xf32>
    %c0_34 = arith.constant 0 : index
    %c0_35 = arith.constant 0 : index
    %41 = vector.load %arg8[%c0_34, %c0_35] : memref<8x16xf32, #tpu.memory_space<vmem>>, vector<8x16xf32>
    %cst_36 = arith.constant dense<0.000000e+00> : vector<8x16xf32>
    %42 = tpu.matmul %41, %7, %cst_36 {dimension_numbers = #tpu.dot_dimension_numbers<[1], [0], [0], [1], [0, 0, 1, 1], [], []>} : vector<8x16xf32>, vector<16x16xf32>, vector<8x16xf32> -> vector<8x16xf32>
    %43 = arith.addf %40, %42 : vector<8x16xf32>
    %44 = math.tanh %43 : vector<8x16xf32>
    %c0_37 = arith.constant 0 : index
    %c0_38 = arith.constant 0 : index
    %45 = vector.load %arg8[%c0_37, %c0_38] : memref<8x16xf32, #tpu.memory_space<vmem>>, vector<8x16xf32>
    tpu.vector_store %arg8[%c0_37, %c0_38], %44 {strides = array<i32>} : memref<8x16xf32, #tpu.memory_space<vmem>>, vector<8x16xf32>,
    %c4_i32 = arith.constant 4 : i32
    %c8_i32_39 = arith.constant 8 : i32
    %46 = arith.muli %c4_i32, %c8_i32_39 : i32
    %47 = tpu.assume_multiple %46, 8 : i32
    %48 = arith.index_cast %47 : i32 to index
    %c0_40 = arith.constant 0 : index
    %49 = vector.load %arg7[%48, %c0_40] : memref<64x16xf32, #tpu.memory_space<vmem>>, vector<8x16xf32>
    %c0_41 = arith.constant 0 : index
    %c0_42 = arith.constant 0 : index
    %50 = vector.load %arg8[%c0_41, %c0_42] : memref<8x16xf32, #tpu.memory_space<vmem>>, vector<8x16xf32>
    %cst_43 = arith.constant dense<0.000000e+00> : vector<8x16xf32>
    %51 = tpu.matmul %50, %7, %cst_43 {dimension_numbers = #tpu.dot_dimension_numbers<[1], [0], [0], [1], [0, 0, 1, 1], [], []>} : vector<8x16xf32>, vector<16x16xf32>, vector<8x16xf32> -> vector<8x16xf32>
    %52 = arith.addf %49, %51 : vector<8x16xf32>
    %53 = math.tanh %52 : vector<8x16xf32>
    %c0_44 = arith.constant 0 : index
    %c0_45 = arith.constant 0 : index
    %54 = vector.load %arg8[%c0_44, %c0_45] : memref<8x16xf32, #tpu.memory_space<vmem>>, vector<8x16xf32>
    tpu.vector_store %arg8[%c0_44, %c0_45], %53 {strides = array<i32>} : memref<8x16xf32, #tpu.memory_space<vmem>>, vector<8x16xf32>,
    %c5_i32 = arith.constant 5 : i32
    %c8_i32_46 = arith.constant 8 : i32
    %55 = arith.muli %c5_i32, %c8_i32_46 : i32
    %56 = tpu.assume_multiple %55, 8 : i32
    %57 = arith.index_cast %56 : i32 to index
    %c0_47 = arith.constant 0 : index
    %58 = vector.load %arg7[%57, %c0_47] : memref<64x16xf32, #tpu.memory_space<vmem>>, vector<8x16xf32>
    %c0_48 = arith.constant 0 : index
    %c0_49 = arith.constant 0 : index
    %59 = vector.load %arg8[%c0_48, %c0_49] : memref<8x16xf32, #tpu.memory_space<vmem>>, vector<8x16xf32>
    %cst_50 = arith.constant dense<0.000000e+00> : vector<8x16xf32>
    %60 = tpu.matmul %59, %7, %cst_50 {dimension_numbers = #tpu.dot_dimension_numbers<[1], [0], [0], [1], [0, 0, 1, 1], [], []>} : vector<8x16xf32>, vector<16x16xf32>, vector<8x16xf32> -> vector<8x16xf32>
    %61 = arith.addf %58, %60 : vector<8x16xf32>
    %62 = math.tanh %61 : vector<8x16xf32>
    %c0_51 = arith.constant 0 : index
    %c0_52 = arith.constant 0 : index
    %63 = vector.load %arg8[%c0_51, %c0_52] : memref<8x16xf32, #tpu.memory_space<vmem>>, vector<8x16xf32>
    tpu.vector_store %arg8[%c0_51, %c0_52], %62 {strides = array<i32>} : memref<8x16xf32, #tpu.memory_space<vmem>>, vector<8x16xf32>,
    %c6_i32 = arith.constant 6 : i32
    %c8_i32_53 = arith.constant 8 : i32
    %64 = arith.muli %c6_i32, %c8_i32_53 : i32
    %65 = tpu.assume_multiple %64, 8 : i32
    %66 = arith.index_cast %65 : i32 to index
    %c0_54 = arith.constant 0 : index
    %67 = vector.load %arg7[%66, %c0_54] : memref<64x16xf32, #tpu.memory_space<vmem>>, vector<8x16xf32>
    %c0_55 = arith.constant 0 : index
    %c0_56 = arith.constant 0 : index
    %68 = vector.load %arg8[%c0_55, %c0_56] : memref<8x16xf32, #tpu.memory_space<vmem>>, vector<8x16xf32>
    %cst_57 = arith.constant dense<0.000000e+00> : vector<8x16xf32>
    %69 = tpu.matmul %68, %7, %cst_57 {dimension_numbers = #tpu.dot_dimension_numbers<[1], [0], [0], [1], [0, 0, 1, 1], [], []>} : vector<8x16xf32>, vector<16x16xf32>, vector<8x16xf32> -> vector<8x16xf32>
    %70 = arith.addf %67, %69 : vector<8x16xf32>
    %71 = math.tanh %70 : vector<8x16xf32>
    %c0_58 = arith.constant 0 : index
    %c0_59 = arith.constant 0 : index
    %72 = vector.load %arg8[%c0_58, %c0_59] : memref<8x16xf32, #tpu.memory_space<vmem>>, vector<8x16xf32>
    tpu.vector_store %arg8[%c0_58, %c0_59], %71 {strides = array<i32>} : memref<8x16xf32, #tpu.memory_space<vmem>>, vector<8x16xf32>,
    %c7_i32 = arith.constant 7 : i32
    %c8_i32_60 = arith.constant 8 : i32
    %73 = arith.muli %c7_i32, %c8_i32_60 : i32
    %74 = tpu.assume_multiple %73, 8 : i32
    %75 = arith.index_cast %74 : i32 to index
    %c0_61 = arith.constant 0 : index
    %76 = vector.load %arg7[%75, %c0_61] : memref<64x16xf32, #tpu.memory_space<vmem>>, vector<8x16xf32>
    %c0_62 = arith.constant 0 : index
    %c0_63 = arith.constant 0 : index
    %77 = vector.load %arg8[%c0_62, %c0_63] : memref<8x16xf32, #tpu.memory_space<vmem>>, vector<8x16xf32>
    %cst_64 = arith.constant dense<0.000000e+00> : vector<8x16xf32>
    %78 = tpu.matmul %77, %7, %cst_64 {dimension_numbers = #tpu.dot_dimension_numbers<[1], [0], [0], [1], [0, 0, 1, 1], [], []>} : vector<8x16xf32>, vector<16x16xf32>, vector<8x16xf32> -> vector<8x16xf32>
    %79 = arith.addf %76, %78 : vector<8x16xf32>
    %80 = math.tanh %79 : vector<8x16xf32>
    %c0_65 = arith.constant 0 : index
    %c0_66 = arith.constant 0 : index
    %81 = vector.load %arg8[%c0_65, %c0_66] : memref<8x16xf32, #tpu.memory_space<vmem>>, vector<8x16xf32>
    tpu.vector_store %arg8[%c0_65, %c0_66], %80 {strides = array<i32>} : memref<8x16xf32, #tpu.memory_space<vmem>>, vector<8x16xf32>,
    %c8_i32_67 = arith.constant 8 : i32
    %c0_68 = arith.constant 0 : index
    %c0_69 = arith.constant 0 : index
    %82 = vector.load %arg8[%c0_68, %c0_69] : memref<8x16xf32, #tpu.memory_space<vmem>>, vector<8x16xf32>
    %c0_70 = arith.constant 0 : index
    %c0_71 = arith.constant 0 : index
    %83 = vector.load %arg4[%c0_70, %c0_71] : memref<16x8xf32, #tpu.memory_space<vmem>>, vector<16x8xf32>
    %cst_72 = arith.constant dense<0.000000e+00> : vector<8x8xf32>
    %84 = tpu.matmul %82, %83, %cst_72 {dimension_numbers = #tpu.dot_dimension_numbers<[1], [0], [0], [1], [0, 0, 1, 1], [], []>} : vector<8x16xf32>, vector<16x8xf32>, vector<8x8xf32> -> vector<8x8xf32>
    %c0_73 = arith.constant 0 : index
    %c0_74 = arith.constant 0 : index
    %85 = vector.load %arg5[%c0_73, %c0_74] : memref<1x8xf32, #tpu.memory_space<vmem>>, vector<1x8xf32>
    %86 = vector.broadcast %85 : vector<1x8xf32> to vector<8x8xf32>
    %87 = arith.addf %84, %86 : vector<8x8xf32>
    %c0_75 = arith.constant 0 : index
    %c0_76 = arith.constant 0 : index
    %88 = vector.load %arg6[%c0_75, %c0_76] : memref<8x8xf32, #tpu.memory_space<vmem>>, vector<8x8xf32>
    tpu.vector_store %arg6[%c0_75, %c0_76], %87 {strides = array<i32>} : memref<8x8xf32, #tpu.memory_space<vmem>>, vector<8x8xf32>,
    return
  }
}

</mosaic_0001>

<llo_original>
// kernel: tpu_custom_call.1
$region0: #{tpu_custom_call.1}
  #allocation0 [shape = 'u32[]', space=smem, size = 0x4, offset = 0x4, fixed_abs, tag = 'smem constant byte address 0x4 - core index']
  #allocation1 [shape = 'u32[144,128]{1,0:T(1,128)}', space=vmem, size = 0x12000, scoped, tag = 'internal scratch']
  #allocation2 [shape = 'f32[64,16]{1,0:T(8,128)}', space=vmem, size = 0x8000, scoped, tag = 'scratch operand']
  #allocation3 [shape = 'f32[8,16]{1,0:T(8,128)}', space=vmem, size = 0x1000, scoped, tag = 'scratch operand']
  %s0 = inlined_call_operand.vmem [shape: f32[64,58], index: 0, kind: input, shape index: {}]
  %s1 = inlined_call_operand.vmem [shape: f32[58,16], index: 1, kind: input, shape index: {}]
  %s2 = inlined_call_operand.vmem [shape: f32[16,16], index: 2, kind: input, shape index: {}]
  %s3 = inlined_call_operand.vmem [shape: f32[1,16], index: 3, kind: input, shape index: {}]
  %s4 = inlined_call_operand.vmem [shape: f32[16,8], index: 4, kind: input, shape index: {}]
  %s5 = inlined_call_operand.vmem [shape: f32[1,8], index: 5, kind: input, shape index: {}]
  %s6 = inlined_call_operand.hbm [shape: f32[8,8], index: 6, kind: output, shape index: {}]
  %s7 = sld [smem:[#allocation0]]
  $region34: #{tpu_custom_call.1} parent=0
    _
  %s9 = ssub.s32 1, %s7
  %s10 = scalar_select 0, %s9, %s7
  $region1: #{tpu_custom_call.1} parent=0
    #allocation4 [shape = 'u8[4096]{0}', space=vmem, size = 0x1000, scoped, tag = 'output window, operand 0, single buffered']
    #allocation5 [shape = 's32[1]{0}', space=sflag, size = 0x4, scoped, tag = 'scoped memory for tpu_custom_call.1']
    %11 = vsyncpa [#allocation5], 0
    // Predicated region
    $region2: #{tpu_custom_call.1} parent=1 // pred_check
      _
    $region3: #{tpu_custom_call.1} parent=1 // pred_check_branch
      %13 = sbr.rel (0) target = $region5
    $region4: #{tpu_custom_call.1} parent=1 // pred_region
      _
    $region5: #{tpu_custom_call.1} parent=1 // pred_fallthru
      _
    // Predicated region
    $region6: #{tpu_custom_call.1} parent=1 // pred_check
      _
    $region7: #{tpu_custom_call.1} parent=1 // pred_check_branch
      %15 = sbr.rel (0) target = $region9
    $region8: #{tpu_custom_call.1} parent=1 // pred_region
      _
    $region9: #{tpu_custom_call.1} parent=1 // pred_fallthru
      _
    // Predicated region
    $region10: #{tpu_custom_call.1} parent=1 // pred_check
      _
    $region11: #{tpu_custom_call.1} parent=1 // pred_check_branch
      %17 = sbr.rel (0) target = $region13
    $region12: #{tpu_custom_call.1} parent=1 // pred_region
      _
    $region13: #{tpu_custom_call.1} parent=1 // pred_fallthru
      _
    // Predicated region
    $region14: #{tpu_custom_call.1} parent=1 // pred_check
      _
    $region15: #{tpu_custom_call.1} parent=1 // pred_check_branch
      %19 = sbr.rel (0) target = $region17
    $region16: #{tpu_custom_call.1} parent=1 // pred_region
      _
    $region17: #{tpu_custom_call.1} parent=1 // pred_fallthru
      _
    // Predicated region
    $region18: #{tpu_custom_call.1} parent=1 // pred_check
      _
    $region19: #{tpu_custom_call.1} parent=1 // pred_check_branch
      %21 = sbr.rel (0) target = $region21
    $region20: #{tpu_custom_call.1} parent=1 // pred_region
      _
    $region21: #{tpu_custom_call.1} parent=1 // pred_fallthru
      _
    // Predicated region
    $region22: #{tpu_custom_call.1} parent=1 // pred_check
      _
    $region23: #{tpu_custom_call.1} parent=1 // pred_check_branch
      %23 = sbr.rel (0) target = $region25
    $region24: #{tpu_custom_call.1} parent=1 // pred_region
      _
    $region25: #{tpu_custom_call.1} parent=1 // pred_fallthru
      _
    %v24 = vld [vmem:[%s0] sm:$0xff]
    %v25 = vld [vmem:[%s0 + $0x8] sm:$0xff]
    %v26 = vld [vmem:[%s0 + $0x10] sm:$0xff]
    %v27 = vld [vmem:[%s0 + $0x18] sm:$0xff]
    %v28 = vld [vmem:[%s0 + $0x20] sm:$0xff]
    %v29 = vld [vmem:[%s0 + $0x28] sm:$0xff]
    %v30 = vld [vmem:[%s0 + $0x30] sm:$0xff]
    %v31 = vld [vmem:[%s0 + $0x38] sm:$0xff]
    %v32 = vld [vmem:[%s1] sm:$0xff]
    %v33 = vld [vmem:[%s1 + $0x8] sm:$0xff]
    %v34 = vld [vmem:[%s1 + $0x10] sm:$0xff]
    %v35 = vld [vmem:[%s1 + $0x18] sm:$0xff]
    %v36 = vld [vmem:[%s1 + $0x20] sm:$0xff]
    %v37 = vld [vmem:[%s1 + $0x28] sm:$0xff]
    %v38 = vld [vmem:[%s1 + $0x30] sm:$0xff]
    %v39 = vld [vmem:[%s1 + $0x38] sm:$0x3]
    %v40 = vld [vmem:[%s3] sm:$0x1]
    %v42 = vlaneseq
    %v43 = vshrl.u32 %v42, 7
    %v44 = vsub.s32 0, %v43
    %v45 = vrot.slane %v40, %v44
    %vm47 = vcmask 474112
    %v49 = vsel %vm47, %v24, 0
    %v52 = vsel %vm47, %v25, 0
    %v55 = vsel %vm47, %v26, 0
    %v58 = vsel %vm47, %v27, 0
    %v61 = vsel %vm47, %v28, 0
    %v64 = vsel %vm47, %v29, 0
    %v67 = vsel %vm47, %v30, 0
    %v70 = vsel %vm47, %v31, 0
    %vm72 = vcmask 1041408
    %v74 = vsel %vm72, %v39, 0
    %76 = vmatprep.subr.mxu0 0.0
    %77 = vmatpush1.msra.mxu0 %v32
    %78 = vmatprep.subr.mxu0 0.0
    %79 = vmatpush1.msra.mxu0 %v33
    %80 = vmatprep.subr.mxu0 0.0
    %81 = vmatpush1.msra.mxu0 %v34
    %82 = vmatprep.subr.mxu0 0.0
    %83 = vmatpush1.msra.mxu0 %v35
    %84 = vmatprep.subr.mxu0 0.0
    %85 = vmatpush1.msra.mxu0 %v36
    %86 = vmatprep.subr.mxu0 0.0
    %87 = vmatpush1.msra.mxu0 %v37
    %88 = vmatprep.subr.mxu0 0.0
    %89 = vmatpush1.msra.mxu0 %v38
    %90 = vmatprep.subr.mxu0 0.0
    %91 = vmatpush1.msra.mxu0 %v74
    %92 = vmatprep.subr.mxu0 0.0
    %93 = vmatpush1.msra.mxu0 0.0
    %94 = vmatprep.subr.mxu0 0.0
    %95 = vmatpush1.msra.mxu0 0.0
    %96 = vmatprep.subr.mxu0 0.0
    %97 = vmatpush1.msra.mxu0 0.0
    %98 = vmatprep.subr.mxu0 0.0
    %99 = vmatpush1.msra.mxu0 0.0
    %100 = vmatprep.subr.mxu0 0.0
    %101 = vmatpush1.msra.mxu0 0.0
    %102 = vmatprep.subr.mxu0 0.0
    %103 = vmatpush1.msra.mxu0 0.0
    %104 = vmatprep.subr.mxu0 0.0
    %105 = vmatpush1.msra.mxu0 0.0
    %106 = vmatprep.subr.mxu0 0.0
    %107 = vmatpush1.msra.mxu0 0.0
    %108 = vmatprep.subr.mxu0 0.0
    %109 = vmatpush1.msra.mxu0 0.0
    %110 = vmatprep.subr.mxu0 0.0
    %111 = vmatpush1.msra.mxu0 0.0
    %112 = vmatprep.subr.mxu0 0.0
    %113 = vmatpush1.msra.mxu0 0.0
    %114 = vmatprep.subr.mxu0 0.0
    %115 = vmatpush1.msra.mxu0 0.0
    %116 = vmatprep.subr.mxu0 0.0
    %117 = vmatpush1.msra.mxu0 0.0
    %118 = vmatprep.subr.mxu0 0.0
    %119 = vmatpush1.msra.mxu0 0.0
    %120 = vmatprep.subr.mxu0 0.0
    %121 = vmatpush1.msra.mxu0 0.0
    %122 = vmatprep.subr.mxu0 0.0
    %123 = vmatpush1.msra.mxu0 0.0
    %124 = vmatprep.subr.mxu0 0.0
    %125 = vmatpush1.msra.mxu0 0.0
    %126 = vmatprep.subr.mxu0 0.0
    %127 = vmatpush1.msra.mxu0 0.0
    %128 = vmatprep.subr.mxu0 0.0
    %129 = vmatpush1.msra.mxu0 0.0
    %130 = vmatprep.subr.mxu0 0.0
    %131 = vmatpush1.msra.mxu0 0.0
    %132 = vmatprep.subr.mxu0 0.0
    %133 = vmatpush1.msra.mxu0 0.0
    %134 = vmatprep.subr.mxu0 0.0
    %135 = vmatpush1.msra.mxu0 0.0
    %136 = vmatprep.subr.mxu0 0.0
    %137 = vmatpush1.msra.mxu0 0.0
    %138 = vmatprep.subr.mxu0 0.0
    %139 = vmatpush1.msra.mxu0 0.0
    %140 = vmatprep.mubr.f32.mxu0 0.0
    %141 = vmatmul.mubr.f32.gmra.mrb[0].mxu0 %v49
    %v142 = vpop.f32.mrb[0].mxu0
    %v143 = vadd.f32 %v45, %v142
    %v144 = vpop.f32.mrb[0].mxu0
    %145 = vmatprep.mubr.f32.mxu0 0.0
    %146 = vmatmul.mubr.f32.gmra.mrb[0].mxu0 %v52
    %v147 = vpop.f32.mrb[0].mxu0
    %v148 = vadd.f32 %v45, %v147
    %v149 = vpop.f32.mrb[0].mxu0
    %150 = vmatprep.mubr.f32.mxu0 0.0
    %151 = vmatmul.mubr.f32.gmra.mrb[0].mxu0 %v55
    %v152 = vpop.f32.mrb[0].mxu0
    %v153 = vadd.f32 %v45, %v152
    %v154 = vpop.f32.mrb[0].mxu0
    %155 = vmatprep.mubr.f32.mxu0 0.0
    %156 = vmatmul.mubr.f32.gmra.mrb[0].mxu0 %v58
    %v157 = vpop.f32.mrb[0].mxu0
    %v158 = vadd.f32 %v45, %v157
    %v159 = vpop.f32.mrb[0].mxu0
    %160 = vmatprep.mubr.f32.mxu0 0.0
    %161 = vmatmul.mubr.f32.gmra.mrb[0].mxu0 %v61
    %v162 = vpop.f32.mrb[0].mxu0
    %v163 = vadd.f32 %v45, %v162
    %v164 = vpop.f32.mrb[0].mxu0
    %165 = vmatprep.mubr.f32.mxu0 0.0
    %166 = vmatmul.mubr.f32.gmra.mrb[0].mxu0 %v64
    %v167 = vpop.f32.mrb[0].mxu0
    %v168 = vadd.f32 %v45, %v167
    %v169 = vpop.f32.mrb[0].mxu0
    %170 = vmatprep.mubr.f32.mxu0 0.0
    %171 = vmatmul.mubr.f32.gmra.mrb[0].mxu0 %v67
    %v172 = vpop.f32.mrb[0].mxu0
    %v173 = vadd.f32 %v45, %v172
    %v174 = vpop.f32.mrb[0].mxu0
    %175 = vmatprep.mubr.f32.mxu0 0.0
    %176 = vmatmul.mubr.f32.gmra.mrb[0].mxu0 %v70
    %v177 = vpop.f32.mrb[0].mxu0
    %v178 = vadd.f32 %v45, %v177
    %v179 = vpop.f32.mrb[0].mxu0
    %180 = vdwg.mxu0
    %vm181 = vcmask 130048
    %182 = vst.msk [vmem:[#allocation2] sm:$0xff] %vm181, %v143
    %183 = vst.msk [vmem:[#allocation2 + $0x8] sm:$0xff] %vm181, %v148
    %184 = vst.msk [vmem:[#allocation2 + $0x10] sm:$0xff] %vm181, %v153
    %185 = vst.msk [vmem:[#allocation2 + $0x18] sm:$0xff] %vm181, %v158
    %186 = vst.msk [vmem:[#allocation2 + $0x20] sm:$0xff] %vm181, %v163
    %187 = vst.msk [vmem:[#allocation2 + $0x28] sm:$0xff] %vm181, %v168
    %188 = vst.msk [vmem:[#allocation2 + $0x30] sm:$0xff] %vm181, %v173
    %189 = vst.msk [vmem:[#allocation2 + $0x38] sm:$0xff] %vm181, %v178
    %v190 = vld [vmem:[%s2] sm:$0xff]
    %v191 = vld [vmem:[%s2 + $0x8] sm:$0xff]
    %192 = vst.msk [vmem:[#allocation3] sm:$0xff] %vm181, 0.0
    %v193 = vld [vmem:[#allocation2] sm:$0xff]
    %v194 = vld [vmem:[#allocation3] sm:$0xff]
    %v196 = vsel %vm181, %v194, 0
    %198 = vmatprep.subr.mxu0 0.0
    %199 = vmatpush1.msra.mxu0 %v190
    %200 = vmatprep.subr.mxu0 0.0
    %201 = vmatpush1.msra.mxu0 %v191
    %202 = vmatprep.subr.mxu0 0.0
    %203 = vmatpush1.msra.mxu0 0.0
    %204 = vmatprep.subr.mxu0 0.0
    %205 = vmatpush1.msra.mxu0 0.0
    %206 = vmatprep.subr.mxu0 0.0
    %207 = vmatpush1.msra.mxu0 0.0
    %208 = vmatprep.subr.mxu0 0.0
    %209 = vmatpush1.msra.mxu0 0.0
    %210 = vmatprep.subr.mxu0 0.0
    %211 = vmatpush1.msra.mxu0 0.0
    %212 = vmatprep.subr.mxu0 0.0
    %213 = vmatpush1.msra.mxu0 0.0
    %214 = vmatprep.subr.mxu0 0.0
    %215 = vmatpush1.msra.mxu0 0.0
    %216 = vmatprep.subr.mxu0 0.0
    %217 = vmatpush1.msra.mxu0 0.0
    %218 = vmatprep.subr.mxu0 0.0
    %219 = vmatpush1.msra.mxu0 0.0
    %220 = vmatprep.subr.mxu0 0.0
    %221 = vmatpush1.msra.mxu0 0.0
    %222 = vmatprep.subr.mxu0 0.0
    %223 = vmatpush1.msra.mxu0 0.0
    %224 = vmatprep.subr.mxu0 0.0
    %225 = vmatpush1.msra.mxu0 0.0
    %226 = vmatprep.subr.mxu0 0.0
    %227 = vmatpush1.msra.mxu0 0.0
    %228 = vmatprep.subr.mxu0 0.0
    %229 = vmatpush1.msra.mxu0 0.0
    %230 = vmatprep.subr.mxu0 0.0
    %231 = vmatpush1.msra.mxu0 0.0
    %232 = vmatprep.subr.mxu0 0.0
    %233 = vmatpush1.msra.mxu0 0.0
    %234 = vmatprep.subr.mxu0 0.0
    %235 = vmatpush1.msra.mxu0 0.0
    %236 = vmatprep.subr.mxu0 0.0
    %237 = vmatpush1.msra.mxu0 0.0
    %238 = vmatprep.subr.mxu0 0.0
    %239 = vmatpush1.msra.mxu0 0.0
    %240 = vmatprep.subr.mxu0 0.0
    %241 = vmatpush1.msra.mxu0 0.0
    %242 = vmatprep.subr.mxu0 0.0
    %243 = vmatpush1.msra.mxu0 0.0
    %244 = vmatprep.subr.mxu0 0.0
    %245 = vmatpush1.msra.mxu0 0.0
    %246 = vmatprep.subr.mxu0 0.0
    %247 = vmatpush1.msra.mxu0 0.0
    %248 = vmatprep.subr.mxu0 0.0
    %249 = vmatpush1.msra.mxu0 0.0
    %250 = vmatprep.subr.mxu0 0.0
    %251 = vmatpush1.msra.mxu0 0.0
    %252 = vmatprep.subr.mxu0 0.0
    %253 = vmatpush1.msra.mxu0 0.0
    %254 = vmatprep.subr.mxu0 0.0
    %255 = vmatpush1.msra.mxu0 0.0
    %256 = vmatprep.subr.mxu0 0.0
    %257 = vmatpush1.msra.mxu0 0.0
    %258 = vmatprep.subr.mxu0 0.0
    %259 = vmatpush1.msra.mxu0 0.0
    %260 = vmatprep.subr.mxu0 0.0
    %261 = vmatpush1.msra.mxu0 0.0
    %262 = vmatprep.mubr.f32.mxu0 0.0
    %263 = vmatmul.mubr.f32.gmra.mrb[0].mxu0 %v196
    %v264 = vpop.f32.mrb[0].mxu0
    %v265 = vadd.f32 0.0, %v264
    %v266 = vpop.f32.mrb[0].mxu0
    %267 = vdwg.mxu0
    %v268 = vadd.f32 %v193, %v265
    %v269 = vtanh.pop %v268
    %270 = vst.msk [vmem:[#allocation3] sm:$0xff] %vm181, %v269
    %s271 = scalar_lea.vmem [#allocation2], 8
    %v272 = vld [vmem:[%s271] sm:$0xff]
    %v273 = vld [vmem:[#allocation3] sm:$0xff]
    %v275 = vsel %vm181, %v273, 0
    %277 = vmatprep.subr.mxu0 0.0
    %278 = vmatpush1.msra.mxu0 %v190
    %279 = vmatprep.subr.mxu0 0.0
    %280 = vmatpush1.msra.mxu0 %v191
    %281 = vmatprep.subr.mxu0 0.0
    %282 = vmatpush1.msra.mxu0 0.0
    %283 = vmatprep.subr.mxu0 0.0
    %284 = vmatpush1.msra.mxu0 0.0
    %285 = vmatprep.subr.mxu0 0.0
    %286 = vmatpush1.msra.mxu0 0.0
    %287 = vmatprep.subr.mxu0 0.0
    %288 = vmatpush1.msra.mxu0 0.0
    %289 = vmatprep.subr.mxu0 0.0
    %290 = vmatpush1.msra.mxu0 0.0
    %291 = vmatprep.subr.mxu0 0.0
    %292 = vmatpush1.msra.mxu0 0.0
    %293 = vmatprep.subr.mxu0 0.0
    %294 = vmatpush1.msra.mxu0 0.0
    %295 = vmatprep.subr.mxu0 0.0
    %296 = vmatpush1.msra.mxu0 0.0
    %297 = vmatprep.subr.mxu0 0.0
    %298 = vmatpush1.msra.mxu0 0.0
    %299 = vmatprep.subr.mxu0 0.0
    %300 = vmatpush1.msra.mxu0 0.0
    %301 = vmatprep.subr.mxu0 0.0
    %302 = vmatpush1.msra.mxu0 0.0
    %303 = vmatprep.subr.mxu0 0.0
    %304 = vmatpush1.msra.mxu0 0.0
    %305 = vmatprep.subr.mxu0 0.0
    %306 = vmatpush1.msra.mxu0 0.0
    %307 = vmatprep.subr.mxu0 0.0
    %308 = vmatpush1.msra.mxu0 0.0
    %309 = vmatprep.subr.mxu0 0.0
    %310 = vmatpush1.msra.mxu0 0.0
    %311 = vmatprep.subr.mxu0 0.0
    %312 = vmatpush1.msra.mxu0 0.0
    %313 = vmatprep.subr.mxu0 0.0
    %314 = vmatpush1.msra.mxu0 0.0
    %315 = vmatprep.subr.mxu0 0.0
    %316 = vmatpush1.msra.mxu0 0.0
    %317 = vmatprep.subr.mxu0 0.0
    %318 = vmatpush1.msra.mxu0 0.0
    %319 = vmatprep.subr.mxu0 0.0
    %320 = vmatpush1.msra.mxu0 0.0
    %321 = vmatprep.subr.mxu0 0.0
    %322 = vmatpush1.msra.mxu0 0.0
    %323 = vmatprep.subr.mxu0 0.0
    %324 = vmatpush1.msra.mxu0 0.0
    %325 = vmatprep.subr.mxu0 0.0
    %326 = vmatpush1.msra.mxu0 0.0
    %327 = vmatprep.subr.mxu0 0.0
    %328 = vmatpush1.msra.mxu0 0.0
    %329 = vmatprep.subr.mxu0 0.0
    %330 = vmatpush1.msra.mxu0 0.0
    %331 = vmatprep.subr.mxu0 0.0
    %332 = vmatpush1.msra.mxu0 0.0
    %333 = vmatprep.subr.mxu0 0.0
    %334 = vmatpush1.msra.mxu0 0.0
    %335 = vmatprep.subr.mxu0 0.0
    %336 = vmatpush1.msra.mxu0 0.0
    %337 = vmatprep.subr.mxu0 0.0
    %338 = vmatpush1.msra.mxu0 0.0
    %339 = vmatprep.subr.mxu0 0.0
    %340 = vmatpush1.msra.mxu0 0.0
    %341 = vmatprep.mubr.f32.mxu0 0.0
    %342 = vmatmul.mubr.f32.gmra.mrb[0].mxu0 %v275
    %v343 = vpop.f32.mrb[0].mxu0
    %v344 = vadd.f32 0.0, %v343
    %v345 = vpop.f32.mrb[0].mxu0
    %346 = vdwg.mxu0
    %v347 = vadd.f32 %v272, %v344
    %v348 = vtanh.pop %v347
    %349 = vst.msk [vmem:[#allocation3] sm:$0xff] %vm181, %v348
    %s350 = scalar_lea.vmem [#allocation2], 16
    %v351 = vld [vmem:[%s350] sm:$0xff]
    %v352 = vld [vmem:[#allocation3] sm:$0xff]
    %v354 = vsel %vm181, %v352, 0
    %356 = vmatprep.subr.mxu0 0.0
    %357 = vmatpush1.msra.mxu0 %v190
    %358 = vmatprep.subr.mxu0 0.0
    %359 = vmatpush1.msra.mxu0 %v191
    %360 = vmatprep.subr.mxu0 0.0
    %361 = vmatpush1.msra.mxu0 0.0
    %362 = vmatprep.subr.mxu0 0.0
    %363 = vmatpush1.msra.mxu0 0.0
    %364 = vmatprep.subr.mxu0 0.0
    %365 = vmatpush1.msra.mxu0 0.0
    %366 = vmatprep.subr.mxu0 0.0
    %367 = vmatpush1.msra.mxu0 0.0
    %368 = vmatprep.subr.mxu0 0.0
    %369 = vmatpush1.msra.mxu0 0.0
    %370 = vmatprep.subr.mxu0 0.0
    %371 = vmatpush1.msra.mxu0 0.0
    %372 = vmatprep.subr.mxu0 0.0
    %373 = vmatpush1.msra.mxu0 0.0
    %374 = vmatprep.subr.mxu0 0.0
    %375 = vmatpush1.msra.mxu0 0.0
    %376 = vmatprep.subr.mxu0 0.0
    %377 = vmatpush1.msra.mxu0 0.0
    %378 = vmatprep.subr.mxu0 0.0
    %379 = vmatpush1.msra.mxu0 0.0
    %380 = vmatprep.subr.mxu0 0.0
    %381 = vmatpush1.msra.mxu0 0.0
    %382 = vmatprep.subr.mxu0 0.0
    %383 = vmatpush1.msra.mxu0 0.0
    %384 = vmatprep.subr.mxu0 0.0
    %385 = vmatpush1.msra.mxu0 0.0
    %386 = vmatprep.subr.mxu0 0.0
    %387 = vmatpush1.msra.mxu0 0.0
    %388 = vmatprep.subr.mxu0 0.0
    %389 = vmatpush1.msra.mxu0 0.0
    %390 = vmatprep.subr.mxu0 0.0
    %391 = vmatpush1.msra.mxu0 0.0
    %392 = vmatprep.subr.mxu0 0.0
    %393 = vmatpush1.msra.mxu0 0.0
    %394 = vmatprep.subr.mxu0 0.0
    %395 = vmatpush1.msra.mxu0 0.0
    %396 = vmatprep.subr.mxu0 0.0
    %397 = vmatpush1.msra.mxu0 0.0
    %398 = vmatprep.subr.mxu0 0.0
    %399 = vmatpush1.msra.mxu0 0.0
    %400 = vmatprep.subr.mxu0 0.0
    %401 = vmatpush1.msra.mxu0 0.0
    %402 = vmatprep.subr.mxu0 0.0
    %403 = vmatpush1.msra.mxu0 0.0
    %404 = vmatprep.subr.mxu0 0.0
    %405 = vmatpush1.msra.mxu0 0.0
    %406 = vmatprep.subr.mxu0 0.0
    %407 = vmatpush1.msra.mxu0 0.0
    %408 = vmatprep.subr.mxu0 0.0
    %409 = vmatpush1.msra.mxu0 0.0
    %410 = vmatprep.subr.mxu0 0.0
    %411 = vmatpush1.msra.mxu0 0.0
    %412 = vmatprep.subr.mxu0 0.0
    %413 = vmatpush1.msra.mxu0 0.0
    %414 = vmatprep.subr.mxu0 0.0
    %415 = vmatpush1.msra.mxu0 0.0
    %416 = vmatprep.subr.mxu0 0.0
    %417 = vmatpush1.msra.mxu0 0.0
    %418 = vmatprep.subr.mxu0 0.0
    %419 = vmatpush1.msra.mxu0 0.0
    %420 = vmatprep.mubr.f32.mxu0 0.0
    %421 = vmatmul.mubr.f32.gmra.mrb[0].mxu0 %v354
    %v422 = vpop.f32.mrb[0].mxu0
    %v423 = vadd.f32 0.0, %v422
    %v424 = vpop.f32.mrb[0].mxu0
    %425 = vdwg.mxu0
    %v426 = vadd.f32 %v351, %v423
    %v427 = vtanh.pop %v426
    %428 = vst.msk [vmem:[#allocation3] sm:$0xff] %vm181, %v427
    %s429 = scalar_lea.vmem [#allocation2], 24
    %v430 = vld [vmem:[%s429] sm:$0xff]
    %v431 = vld [vmem:[#allocation3] sm:$0xff]
    %v433 = vsel %vm181, %v431, 0
    %435 = vmatprep.subr.mxu0 0.0
    %436 = vmatpush1.msra.mxu0 %v190
    %437 = vmatprep.subr.mxu0 0.0
    %438 = vmatpush1.msra.mxu0 %v191
    %439 = vmatprep.subr.mxu0 0.0
    %440 = vmatpush1.msra.mxu0 0.0
    %441 = vmatprep.subr.mxu0 0.0
    %442 = vmatpush1.msra.mxu0 0.0
    %443 = vmatprep.subr.mxu0 0.0
    %444 = vmatpush1.msra.mxu0 0.0
    %445 = vmatprep.subr.mxu0 0.0
    %446 = vmatpush1.msra.mxu0 0.0
    %447 = vmatprep.subr.mxu0 0.0
    %448 = vmatpush1.msra.mxu0 0.0
    %449 = vmatprep.subr.mxu0 0.0
    %450 = vmatpush1.msra.mxu0 0.0
    %451 = vmatprep.subr.mxu0 0.0
    %452 = vmatpush1.msra.mxu0 0.0
    %453 = vmatprep.subr.mxu0 0.0
    %454 = vmatpush1.msra.mxu0 0.0
    %455 = vmatprep.subr.mxu0 0.0
    %456 = vmatpush1.msra.mxu0 0.0
    %457 = vmatprep.subr.mxu0 0.0
    %458 = vmatpush1.msra.mxu0 0.0
    %459 = vmatprep.subr.mxu0 0.0
    %460 = vmatpush1.msra.mxu0 0.0
    %461 = vmatprep.subr.mxu0 0.0
    %462 = vmatpush1.msra.mxu0 0.0
    %463 = vmatprep.subr.mxu0 0.0
    %464 = vmatpush1.msra.mxu0 0.0
    %465 = vmatprep.subr.mxu0 0.0
    %466 = vmatpush1.msra.mxu0 0.0
    %467 = vmatprep.subr.mxu0 0.0
    %468 = vmatpush1.msra.mxu0 0.0
    %469 = vmatprep.subr.mxu0 0.0
    %470 = vmatpush1.msra.mxu0 0.0
    %471 = vmatprep.subr.mxu0 0.0
    %472 = vmatpush1.msra.mxu0 0.0
    %473 = vmatprep.subr.mxu0 0.0
    %474 = vmatpush1.msra.mxu0 0.0
    %475 = vmatprep.subr.mxu0 0.0
    %476 = vmatpush1.msra.mxu0 0.0
    %477 = vmatprep.subr.mxu0 0.0
    %478 = vmatpush1.msra.mxu0 0.0
    %479 = vmatprep.subr.mxu0 0.0
    %480 = vmatpush1.msra.mxu0 0.0
    %481 = vmatprep.subr.mxu0 0.0
    %482 = vmatpush1.msra.mxu0 0.0
    %483 = vmatprep.subr.mxu0 0.0
    %484 = vmatpush1.msra.mxu0 0.0
    %485 = vmatprep.subr.mxu0 0.0
    %486 = vmatpush1.msra.mxu0 0.0
    %487 = vmatprep.subr.mxu0 0.0
    %488 = vmatpush1.msra.mxu0 0.0
    %489 = vmatprep.subr.mxu0 0.0
    %490 = vmatpush1.msra.mxu0 0.0
    %491 = vmatprep.subr.mxu0 0.0
    %492 = vmatpush1.msra.mxu0 0.0
    %493 = vmatprep.subr.mxu0 0.0
    %494 = vmatpush1.msra.mxu0 0.0
    %495 = vmatprep.subr.mxu0 0.0
    %496 = vmatpush1.msra.mxu0 0.0
    %497 = vmatprep.subr.mxu0 0.0
    %498 = vmatpush1.msra.mxu0 0.0
    %499 = vmatprep.mubr.f32.mxu0 0.0
    %500 = vmatmul.mubr.f32.gmra.mrb[0].mxu0 %v433
    %v501 = vpop.f32.mrb[0].mxu0
    %v502 = vadd.f32 0.0, %v501
    %v503 = vpop.f32.mrb[0].mxu0
    %504 = vdwg.mxu0
    %v505 = vadd.f32 %v430, %v502
    %v506 = vtanh.pop %v505
    %507 = vst.msk [vmem:[#allocation3] sm:$0xff] %vm181, %v506
    %s508 = scalar_lea.vmem [#allocation2], 32
    %v509 = vld [vmem:[%s508] sm:$0xff]
    %v510 = vld [vmem:[#allocation3] sm:$0xff]
    %v512 = vsel %vm181, %v510, 0
    %514 = vmatprep.subr.mxu0 0.0
    %515 = vmatpush1.msra.mxu0 %v190
    %516 = vmatprep.subr.mxu0 0.0
    %517 = vmatpush1.msra.mxu0 %v191
    %518 = vmatprep.subr.mxu0 0.0
    %519 = vmatpush1.msra.mxu0 0.0
    %520 = vmatprep.subr.mxu0 0.0
    %521 = vmatpush1.msra.mxu0 0.0
    %522 = vmatprep.subr.mxu0 0.0
    %523 = vmatpush1.msra.mxu0 0.0
    %524 = vmatprep.subr.mxu0 0.0
    %525 = vmatpush1.msra.mxu0 0.0
    %526 = vmatprep.subr.mxu0 0.0
    %527 = vmatpush1.msra.mxu0 0.0
    %528 = vmatprep.subr.mxu0 0.0
    %529 = vmatpush1.msra.mxu0 0.0
    %530 = vmatprep.subr.mxu0 0.0
    %531 = vmatpush1.msra.mxu0 0.0
    %532 = vmatprep.subr.mxu0 0.0
    %533 = vmatpush1.msra.mxu0 0.0
    %534 = vmatprep.subr.mxu0 0.0
    %535 = vmatpush1.msra.mxu0 0.0
    %536 = vmatprep.subr.mxu0 0.0
    %537 = vmatpush1.msra.mxu0 0.0
    %538 = vmatprep.subr.mxu0 0.0
    %539 = vmatpush1.msra.mxu0 0.0
    %540 = vmatprep.subr.mxu0 0.0
    %541 = vmatpush1.msra.mxu0 0.0
    %542 = vmatprep.subr.mxu0 0.0
    %543 = vmatpush1.msra.mxu0 0.0
    %544 = vmatprep.subr.mxu0 0.0
    %545 = vmatpush1.msra.mxu0 0.0
    %546 = vmatprep.subr.mxu0 0.0
    %547 = vmatpush1.msra.mxu0 0.0
    %548 = vmatprep.subr.mxu0 0.0
    %549 = vmatpush1.msra.mxu0 0.0
    %550 = vmatprep.subr.mxu0 0.0
    %551 = vmatpush1.msra.mxu0 0.0
    %552 = vmatprep.subr.mxu0 0.0
    %553 = vmatpush1.msra.mxu0 0.0
    %554 = vmatprep.subr.mxu0 0.0
    %555 = vmatpush1.msra.mxu0 0.0
    %556 = vmatprep.subr.mxu0 0.0
    %557 = vmatpush1.msra.mxu0 0.0
    %558 = vmatprep.subr.mxu0 0.0
    %559 = vmatpush1.msra.mxu0 0.0
    %560 = vmatprep.subr.mxu0 0.0
    %561 = vmatpush1.msra.mxu0 0.0
    %562 = vmatprep.subr.mxu0 0.0
    %563 = vmatpush1.msra.mxu0 0.0
    %564 = vmatprep.subr.mxu0 0.0
    %565 = vmatpush1.msra.mxu0 0.0
    %566 = vmatprep.subr.mxu0 0.0
    %567 = vmatpush1.msra.mxu0 0.0
    %568 = vmatprep.subr.mxu0 0.0
    %569 = vmatpush1.msra.mxu0 0.0
    %570 = vmatprep.subr.mxu0 0.0
    %571 = vmatpush1.msra.mxu0 0.0
    %572 = vmatprep.subr.mxu0 0.0
    %573 = vmatpush1.msra.mxu0 0.0
    %574 = vmatprep.subr.mxu0 0.0
    %575 = vmatpush1.msra.mxu0 0.0
    %576 = vmatprep.subr.mxu0 0.0
    %577 = vmatpush1.msra.mxu0 0.0
    %578 = vmatprep.mubr.f32.mxu0 0.0
    %579 = vmatmul.mubr.f32.gmra.mrb[0].mxu0 %v512
    %v580 = vpop.f32.mrb[0].mxu0
    %v581 = vadd.f32 0.0, %v580
    %v582 = vpop.f32.mrb[0].mxu0
    %583 = vdwg.mxu0
    %v584 = vadd.f32 %v509, %v581
    %v585 = vtanh.pop %v584
    %586 = vst.msk [vmem:[#allocation3] sm:$0xff] %vm181, %v585
    %s587 = scalar_lea.vmem [#allocation2], 40
    %v588 = vld [vmem:[%s587] sm:$0xff]
    %v589 = vld [vmem:[#allocation3] sm:$0xff]
    %v591 = vsel %vm181, %v589, 0
    %593 = vmatprep.subr.mxu0 0.0
    %594 = vmatpush1.msra.mxu0 %v190
    %595 = vmatprep.subr.mxu0 0.0
    %596 = vmatpush1.msra.mxu0 %v191
    %597 = vmatprep.subr.mxu0 0.0
    %598 = vmatpush1.msra.mxu0 0.0
    %599 = vmatprep.subr.mxu0 0.0
    %600 = vmatpush1.msra.mxu0 0.0
    %601 = vmatprep.subr.mxu0 0.0
    %602 = vmatpush1.msra.mxu0 0.0
    %603 = vmatprep.subr.mxu0 0.0
    %604 = vmatpush1.msra.mxu0 0.0
    %605 = vmatprep.subr.mxu0 0.0
    %606 = vmatpush1.msra.mxu0 0.0
    %607 = vmatprep.subr.mxu0 0.0
    %608 = vmatpush1.msra.mxu0 0.0
    %609 = vmatprep.subr.mxu0 0.0
    %610 = vmatpush1.msra.mxu0 0.0
    %611 = vmatprep.subr.mxu0 0.0
    %612 = vmatpush1.msra.mxu0 0.0
    %613 = vmatprep.subr.mxu0 0.0
    %614 = vmatpush1.msra.mxu0 0.0
    %615 = vmatprep.subr.mxu0 0.0
    %616 = vmatpush1.msra.mxu0 0.0
    %617 = vmatprep.subr.mxu0 0.0
    %618 = vmatpush1.msra.mxu0 0.0
    %619 = vmatprep.subr.mxu0 0.0
    %620 = vmatpush1.msra.mxu0 0.0
    %621 = vmatprep.subr.mxu0 0.0
    %622 = vmatpush1.msra.mxu0 0.0
    %623 = vmatprep.subr.mxu0 0.0
    %624 = vmatpush1.msra.mxu0 0.0
    %625 = vmatprep.subr.mxu0 0.0
    %626 = vmatpush1.msra.mxu0 0.0
    %627 = vmatprep.subr.mxu0 0.0
    %628 = vmatpush1.msra.mxu0 0.0
    %629 = vmatprep.subr.mxu0 0.0
    %630 = vmatpush1.msra.mxu0 0.0
    %631 = vmatprep.subr.mxu0 0.0
    %632 = vmatpush1.msra.mxu0 0.0
    %633 = vmatprep.subr.mxu0 0.0
    %634 = vmatpush1.msra.mxu0 0.0
    %635 = vmatprep.subr.mxu0 0.0
    %636 = vmatpush1.msra.mxu0 0.0
    %637 = vmatprep.subr.mxu0 0.0
    %638 = vmatpush1.msra.mxu0 0.0
    %639 = vmatprep.subr.mxu0 0.0
    %640 = vmatpush1.msra.mxu0 0.0
    %641 = vmatprep.subr.mxu0 0.0
    %642 = vmatpush1.msra.mxu0 0.0
    %643 = vmatprep.subr.mxu0 0.0
    %644 = vmatpush1.msra.mxu0 0.0
    %645 = vmatprep.subr.mxu0 0.0
    %646 = vmatpush1.msra.mxu0 0.0
    %647 = vmatprep.subr.mxu0 0.0
    %648 = vmatpush1.msra.mxu0 0.0
    %649 = vmatprep.subr.mxu0 0.0
    %650 = vmatpush1.msra.mxu0 0.0
    %651 = vmatprep.subr.mxu0 0.0
    %652 = vmatpush1.msra.mxu0 0.0
    %653 = vmatprep.subr.mxu0 0.0
    %654 = vmatpush1.msra.mxu0 0.0
    %655 = vmatprep.subr.mxu0 0.0
    %656 = vmatpush1.msra.mxu0 0.0
    %657 = vmatprep.mubr.f32.mxu0 0.0
    %658 = vmatmul.mubr.f32.gmra.mrb[0].mxu0 %v591
    %v659 = vpop.f32.mrb[0].mxu0
    %v660 = vadd.f32 0.0, %v659
    %v661 = vpop.f32.mrb[0].mxu0
    %662 = vdwg.mxu0
    %v663 = vadd.f32 %v588, %v660
    %v664 = vtanh.pop %v663
    %665 = vst.msk [vmem:[#allocation3] sm:$0xff] %vm181, %v664
    %s666 = scalar_lea.vmem [#allocation2], 48
    %v667 = vld [vmem:[%s666] sm:$0xff]
    %v668 = vld [vmem:[#allocation3] sm:$0xff]
    %v670 = vsel %vm181, %v668, 0
    %672 = vmatprep.subr.mxu0 0.0
    %673 = vmatpush1.msra.mxu0 %v190
    %674 = vmatprep.subr.mxu0 0.0
    %675 = vmatpush1.msra.mxu0 %v191
    %676 = vmatprep.subr.mxu0 0.0
    %677 = vmatpush1.msra.mxu0 0.0
    %678 = vmatprep.subr.mxu0 0.0
    %679 = vmatpush1.msra.mxu0 0.0
    %680 = vmatprep.subr.mxu0 0.0
    %681 = vmatpush1.msra.mxu0 0.0
    %682 = vmatprep.subr.mxu0 0.0
    %683 = vmatpush1.msra.mxu0 0.0
    %684 = vmatprep.subr.mxu0 0.0
    %685 = vmatpush1.msra.mxu0 0.0
    %686 = vmatprep.subr.mxu0 0.0
    %687 = vmatpush1.msra.mxu0 0.0
    %688 = vmatprep.subr.mxu0 0.0
    %689 = vmatpush1.msra.mxu0 0.0
    %690 = vmatprep.subr.mxu0 0.0
    %691 = vmatpush1.msra.mxu0 0.0
    %692 = vmatprep.subr.mxu0 0.0
    %693 = vmatpush1.msra.mxu0 0.0
    %694 = vmatprep.subr.mxu0 0.0
    %695 = vmatpush1.msra.mxu0 0.0
    %696 = vmatprep.subr.mxu0 0.0
    %697 = vmatpush1.msra.mxu0 0.0
    %698 = vmatprep.subr.mxu0 0.0
    %699 = vmatpush1.msra.mxu0 0.0
    %700 = vmatprep.subr.mxu0 0.0
    %701 = vmatpush1.msra.mxu0 0.0
    %702 = vmatprep.subr.mxu0 0.0
    %703 = vmatpush1.msra.mxu0 0.0
    %704 = vmatprep.subr.mxu0 0.0
    %705 = vmatpush1.msra.mxu0 0.0
    %706 = vmatprep.subr.mxu0 0.0
    %707 = vmatpush1.msra.mxu0 0.0
    %708 = vmatprep.subr.mxu0 0.0
    %709 = vmatpush1.msra.mxu0 0.0
    %710 = vmatprep.subr.mxu0 0.0
    %711 = vmatpush1.msra.mxu0 0.0
    %712 = vmatprep.subr.mxu0 0.0
    %713 = vmatpush1.msra.mxu0 0.0
    %714 = vmatprep.subr.mxu0 0.0
    %715 = vmatpush1.msra.mxu0 0.0
    %716 = vmatprep.subr.mxu0 0.0
    %717 = vmatpush1.msra.mxu0 0.0
    %718 = vmatprep.subr.mxu0 0.0
    %719 = vmatpush1.msra.mxu0 0.0
    %720 = vmatprep.subr.mxu0 0.0
    %721 = vmatpush1.msra.mxu0 0.0
    %722 = vmatprep.subr.mxu0 0.0
    %723 = vmatpush1.msra.mxu0 0.0
    %724 = vmatprep.subr.mxu0 0.0
    %725 = vmatpush1.msra.mxu0 0.0
    %726 = vmatprep.subr.mxu0 0.0
    %727 = vmatpush1.msra.mxu0 0.0
    %728 = vmatprep.subr.mxu0 0.0
    %729 = vmatpush1.msra.mxu0 0.0
    %730 = vmatprep.subr.mxu0 0.0
    %731 = vmatpush1.msra.mxu0 0.0
    %732 = vmatprep.subr.mxu0 0.0
    %733 = vmatpush1.msra.mxu0 0.0
    %734 = vmatprep.subr.mxu0 0.0
    %735 = vmatpush1.msra.mxu0 0.0
    %736 = vmatprep.mubr.f32.mxu0 0.0
    %737 = vmatmul.mubr.f32.gmra.mrb[0].mxu0 %v670
    %v738 = vpop.f32.mrb[0].mxu0
    %v739 = vadd.f32 0.0, %v738
    %v740 = vpop.f32.mrb[0].mxu0
    %741 = vdwg.mxu0
    %v742 = vadd.f32 %v667, %v739
    %v743 = vtanh.pop %v742
    %744 = vst.msk [vmem:[#allocation3] sm:$0xff] %vm181, %v743
    %s745 = scalar_lea.vmem [#allocation2], 56
    %v746 = vld [vmem:[%s745] sm:$0xff]
    %v747 = vld [vmem:[#allocation3] sm:$0xff]
    %v749 = vsel %vm181, %v747, 0
    %751 = vmatprep.subr.mxu0 0.0
    %752 = vmatpush1.msra.mxu0 %v190
    %753 = vmatprep.subr.mxu0 0.0
    %754 = vmatpush1.msra.mxu0 %v191
    %755 = vmatprep.subr.mxu0 0.0
    %756 = vmatpush1.msra.mxu0 0.0
    %757 = vmatprep.subr.mxu0 0.0
    %758 = vmatpush1.msra.mxu0 0.0
    %759 = vmatprep.subr.mxu0 0.0
    %760 = vmatpush1.msra.mxu0 0.0
    %761 = vmatprep.subr.mxu0 0.0
    %762 = vmatpush1.msra.mxu0 0.0
    %763 = vmatprep.subr.mxu0 0.0
    %764 = vmatpush1.msra.mxu0 0.0
    %765 = vmatprep.subr.mxu0 0.0
    %766 = vmatpush1.msra.mxu0 0.0
    %767 = vmatprep.subr.mxu0 0.0
    %768 = vmatpush1.msra.mxu0 0.0
    %769 = vmatprep.subr.mxu0 0.0
    %770 = vmatpush1.msra.mxu0 0.0
    %771 = vmatprep.subr.mxu0 0.0
    %772 = vmatpush1.msra.mxu0 0.0
    %773 = vmatprep.subr.mxu0 0.0
    %774 = vmatpush1.msra.mxu0 0.0
    %775 = vmatprep.subr.mxu0 0.0
    %776 = vmatpush1.msra.mxu0 0.0
    %777 = vmatprep.subr.mxu0 0.0
    %778 = vmatpush1.msra.mxu0 0.0
    %779 = vmatprep.subr.mxu0 0.0
    %780 = vmatpush1.msra.mxu0 0.0
    %781 = vmatprep.subr.mxu0 0.0
    %782 = vmatpush1.msra.mxu0 0.0
    %783 = vmatprep.subr.mxu0 0.0
    %784 = vmatpush1.msra.mxu0 0.0
    %785 = vmatprep.subr.mxu0 0.0
    %786 = vmatpush1.msra.mxu0 0.0
    %787 = vmatprep.subr.mxu0 0.0
    %788 = vmatpush1.msra.mxu0 0.0
    %789 = vmatprep.subr.mxu0 0.0
    %790 = vmatpush1.msra.mxu0 0.0
    %791 = vmatprep.subr.mxu0 0.0
    %792 = vmatpush1.msra.mxu0 0.0
    %793 = vmatprep.subr.mxu0 0.0
    %794 = vmatpush1.msra.mxu0 0.0
    %795 = vmatprep.subr.mxu0 0.0
    %796 = vmatpush1.msra.mxu0 0.0
    %797 = vmatprep.subr.mxu0 0.0
    %798 = vmatpush1.msra.mxu0 0.0
    %799 = vmatprep.subr.mxu0 0.0
    %800 = vmatpush1.msra.mxu0 0.0
    %801 = vmatprep.subr.mxu0 0.0
    %802 = vmatpush1.msra.mxu0 0.0
    %803 = vmatprep.subr.mxu0 0.0
    %804 = vmatpush1.msra.mxu0 0.0
    %805 = vmatprep.subr.mxu0 0.0
    %806 = vmatpush1.msra.mxu0 0.0
    %807 = vmatprep.subr.mxu0 0.0
    %808 = vmatpush1.msra.mxu0 0.0
    %809 = vmatprep.subr.mxu0 0.0
    %810 = vmatpush1.msra.mxu0 0.0
    %811 = vmatprep.subr.mxu0 0.0
    %812 = vmatpush1.msra.mxu0 0.0
    %813 = vmatprep.subr.mxu0 0.0
    %814 = vmatpush1.msra.mxu0 0.0
    %815 = vmatprep.mubr.f32.mxu0 0.0
    %816 = vmatmul.mubr.f32.gmra.mrb[0].mxu0 %v749
    %v817 = vpop.f32.mrb[0].mxu0
    %v818 = vadd.f32 0.0, %v817
    %v819 = vpop.f32.mrb[0].mxu0
    %820 = vdwg.mxu0
    %v821 = vadd.f32 %v746, %v818
    %v822 = vtanh.pop %v821
    %823 = vst.msk [vmem:[#allocation3] sm:$0xff] %vm181, %v822
    %v824 = vld [vmem:[#allocation3] sm:$0xff]
    %v825 = vld [vmem:[%s4] sm:$0xff]
    %v826 = vld [vmem:[%s4 + $0x8] sm:$0xff]
    %v827 = vld [vmem:[%s5] sm:$0x1]
    %v829 = vlaneseq
    %v830 = vshrl.u32 %v829, 7
    %v831 = vsub.s32 0, %v830
    %v832 = vrot.slane %v827, %v831
    %v835 = vsel %vm181, %v824, 0
    %837 = vmatprep.subr.mxu0 0.0
    %838 = vmatpush1.msra.mxu0 %v825
    %839 = vmatprep.subr.mxu0 0.0
    %840 = vmatpush1.msra.mxu0 %v826
    %841 = vmatprep.subr.mxu0 0.0
    %842 = vmatpush1.msra.mxu0 0.0
    %843 = vmatprep.subr.mxu0 0.0
    %844 = vmatpush1.msra.mxu0 0.0
    %845 = vmatprep.subr.mxu0 0.0
    %846 = vmatpush1.msra.mxu0 0.0
    %847 = vmatprep.subr.mxu0 0.0
    %848 = vmatpush1.msra.mxu0 0.0
    %849 = vmatprep.subr.mxu0 0.0
    %850 = vmatpush1.msra.mxu0 0.0
    %851 = vmatprep.subr.mxu0 0.0
    %852 = vmatpush1.msra.mxu0 0.0
    %853 = vmatprep.subr.mxu0 0.0
    %854 = vmatpush1.msra.mxu0 0.0
    %855 = vmatprep.subr.mxu0 0.0
    %856 = vmatpush1.msra.mxu0 0.0
    %857 = vmatprep.subr.mxu0 0.0
    %858 = vmatpush1.msra.mxu0 0.0
    %859 = vmatprep.subr.mxu0 0.0
    %860 = vmatpush1.msra.mxu0 0.0
    %861 = vmatprep.subr.mxu0 0.0
    %862 = vmatpush1.msra.mxu0 0.0
    %863 = vmatprep.subr.mxu0 0.0
    %864 = vmatpush1.msra.mxu0 0.0
    %865 = vmatprep.subr.mxu0 0.0
    %866 = vmatpush1.msra.mxu0 0.0
    %867 = vmatprep.subr.mxu0 0.0
    %868 = vmatpush1.msra.mxu0 0.0
    %869 = vmatprep.subr.mxu0 0.0
    %870 = vmatpush1.msra.mxu0 0.0
    %871 = vmatprep.subr.mxu0 0.0
    %872 = vmatpush1.msra.mxu0 0.0
    %873 = vmatprep.subr.mxu0 0.0
    %874 = vmatpush1.msra.mxu0 0.0
    %875 = vmatprep.subr.mxu0 0.0
    %876 = vmatpush1.msra.mxu0 0.0
    %877 = vmatprep.subr.mxu0 0.0
    %878 = vmatpush1.msra.mxu0 0.0
    %879 = vmatprep.subr.mxu0 0.0
    %880 = vmatpush1.msra.mxu0 0.0
    %881 = vmatprep.subr.mxu0 0.0
    %882 = vmatpush1.msra.mxu0 0.0
    %883 = vmatprep.subr.mxu0 0.0
    %884 = vmatpush1.msra.mxu0 0.0
    %885 = vmatprep.subr.mxu0 0.0
    %886 = vmatpush1.msra.mxu0 0.0
    %887 = vmatprep.subr.mxu0 0.0
    %888 = vmatpush1.msra.mxu0 0.0
    %889 = vmatprep.subr.mxu0 0.0
    %890 = vmatpush1.msra.mxu0 0.0
    %891 = vmatprep.subr.mxu0 0.0
    %892 = vmatpush1.msra.mxu0 0.0
    %893 = vmatprep.subr.mxu0 0.0
    %894 = vmatpush1.msra.mxu0 0.0
    %895 = vmatprep.subr.mxu0 0.0
    %896 = vmatpush1.msra.mxu0 0.0
    %897 = vmatprep.subr.mxu0 0.0
    %898 = vmatpush1.msra.mxu0 0.0
    %899 = vmatprep.subr.mxu0 0.0
    %900 = vmatpush1.msra.mxu0 0.0
    %901 = vmatprep.mubr.f32.mxu0 0.0
    %902 = vmatmul.mubr.f32.gmra.mrb[0].mxu0 %v835
    %v903 = vpop.f32.mrb[0].mxu0
    %v904 = vadd.f32 %v832, %v903
    %v905 = vpop.f32.mrb[0].mxu0
    %906 = vdwg.mxu0
    %vm907 = vcmask 64512
    %908 = vst.msk [vmem:[#allocation4] sm:$0xff] %vm907, %v904
    // Predicated region
    $region26: #{tpu_custom_call.1} parent=1 // pred_check
      _
    $region27: #{tpu_custom_call.1} parent=1 // pred_check_branch
      %910 = sbr.rel (0) target = $region29
    $region28: #{tpu_custom_call.1} parent=1 // pred_region
      %s912 = ssub.s32 128, 128
      %913 = vsyncadd [#allocation5], %s912
      %s915 = sshll.u32 [#allocation4], 4
      %s916 = int_to_ptr.vmem [resolvable:$true] %s915
      %918 = dma.vmem_to_hbm [thread:$0]  %s916, 128, %s6, [#allocation5]
    $region29: #{tpu_custom_call.1} parent=1 // pred_fallthru
      _
    // Predicated region
    $region30: #{tpu_custom_call.1} parent=1 // pred_check
      _
    $region31: #{tpu_custom_call.1} parent=1 // pred_check_branch
      %920 = sbr.rel (0) target = $region33
    $region32: #{tpu_custom_call.1} parent=1 // pred_region
      %921 = dma.done [#allocation5], 128
    $region33: #{tpu_custom_call.1} parent=1 // pred_fallthru
      _
    %922 = vsyncpa [#allocation5], 1

</llo_original>
